<compile_context>
chip_gen: v5e
topology: v5e:2x2
jax: 0.10.0
libtpu: 0.0.40
codegen_flags: <defaults>
</compile_context>

<pallas_src>
import numpy as np
import jax
import jax.numpy as jnp
from jax import lax
from jax.experimental import pallas as pl
from jax.experimental.pallas import tpu as pltpu

EPS = 1e-5  # nn.BatchNorm2d default


def _largest_divisor(n, cap, multiple=1):
    """Largest divisor of n that is <= cap and a multiple of `multiple` (falls back to n)."""
    cap = max(1, min(cap, n))
    for d in range(cap, 0, -1):
        if n % d == 0 and d % multiple == 0:
            return d
    return n


# ---------------------------------------------------------------------------
# Kernel 1: MaxUnpool2d(kernel_size=2, stride=2).
# Output is written directly in the interleaved (Hp, 2, Wp, 2*C) layout so the wrapper
# only needs a free row-major reshape to (2Hp, 2Wp, C) - no parts tensor, no transpose.
# ---------------------------------------------------------------------------
def _unpool_kernel(x_ref, idx_ref, o_ref):
    thp, wp, _ = x_ref.shape
    hp0 = pl.program_id(1) * thp                    # global pooled-row offset of this tile
    x = x_ref[...]
    idx = idx_ref[...]
    hp = hp0 + lax.broadcasted_iota(jnp.int32, x.shape, 0)
    wq = lax.broadcasted_iota(jnp.int32, x.shape, 1)
    w_out = 2 * wp
    zero = jnp.zeros_like(x)
    for dy in range(2):
        parts = []
        for dx in range(2):
            target = (2 * hp + dy) * w_out + (2 * wq + dx)
            parts.append(jnp.where(idx == target, x, zero))
        # (thp, wp, 2*C): channel block dx*C+c matches the row-major interleaved layout.
        o_ref[:, dy, :, :] = jnp.concatenate(parts, axis=-1)


def max_unpool2x2(x_nhwc, idx_nhwc, *, hp_tile=None):
    n, hp, wp, c = x_nhwc.shape
    if hp_tile and hp % hp_tile == 0:
        thp = hp_tile
    else:
        thp = _largest_divisor(hp, hp_tile or 64)
    itemsize = np.dtype(x_nhwc.dtype).itemsize
    out = pl.pallas_call(
        _unpool_kernel,
        grid=(n, hp // thp),
        out_shape=jax.ShapeDtypeStruct((n, hp, 2, wp, 2 * c), x_nhwc.dtype),
        in_specs=[
            pl.BlockSpec((None, thp, wp, c), lambda b, i: (b, i, 0, 0)),
            pl.BlockSpec((None, thp, wp, c), lambda b, i: (b, i, 0, 0)),
        ],
        out_specs=pl.BlockSpec((None, thp, 2, wp, 2 * c), lambda b, i: (b, i, 0, 0, 0)),
        compiler_params=pltpu.CompilerParams(
            dimension_semantics=("parallel", "parallel")),
        cost_estimate=pl.CostEstimate(
            flops=10 * n * hp * wp * c,
            transcendentals=0,
            bytes_accessed=n * hp * wp * c * (5 * itemsize + 4)),
    )(x_nhwc, idx_nhwc)
    # free (row-major) reshape to the unpooled image
    return out.reshape(n, 2 * hp, 2 * wp, c)


# ---------------------------------------------------------------------------
# Kernel 2a: Conv3x3(pad=1, stride=1, no bias) + BN partial statistics.
#  - input: zero-padded activations left in HBM (memory_space=pl.ANY); each grid step
#    manually DMAs a halo'd (TH+2, W+2, Cin) row tile into a 2-slot VMEM buffer and
#    prefetches the next tile (double-buffered over the "arbitrary" H-tile axis).
#  - compute: 9 shifted-view dots (TH*W, Cin) x (Cin, Cout) accumulated in f32 (MXU).
#  - outputs: conv tile (compute dtype) + per-tile f32 sum / sum-of-squares over rows.
# ---------------------------------------------------------------------------
def _conv_bn_stats_kernel(xp_hbm, w_ref, y_ref, sum_ref, ssq_ref, xbuf, sem):
    b = pl.program_id(0)
    i = pl.program_id(1)
    nh = pl.num_programs(1)
    th, w_out, cout = y_ref.shape

    def halo_copy(row_tile, slot):
        return pltpu.make_async_copy(
            xp_hbm.at[b, pl.ds(row_tile * th, th + 2)],   # halo'd rows of this image
            xbuf.at[slot],
            sem.at[slot],
        )

    slot = i % 2

    @pl.when(i == 0)                      # prologue: fetch the first tile of this image
    def _():
        halo_copy(i, slot).start()

    @pl.when(i + 1 < nh)                  # prefetch the next tile into the other slot
    def _():
        halo_copy(i + 1, (i + 1) % 2).start()

    halo_copy(i, slot).wait()

    x_tile = xbuf[slot]                   # (th+2, w_out+2, cin), compute dtype
    acc = jnp.zeros((th * w_out, cout), jnp.float32)
    for dy in range(3):                   # 9 shifted-view MXU dots, f32 accumulation
        for dx in range(3):
            patch = x_tile[dy:dy + th, dx:dx + w_out, :].reshape(th * w_out, -1)
            acc = acc + jnp.dot(patch, w_ref[dy * 3 + dx],
                                preferred_element_type=jnp.float32)

    y_ref[...] = acc.reshape(th, w_out, cout).astype(y_ref.dtype)
    sum_ref[...] = jnp.sum(acc, axis=0, keepdims=True)          # f32 partial stats
    ssq_ref[...] = jnp.sum(acc * acc, axis=0, keepdims=True)


# ---------------------------------------------------------------------------
# Kernel 2b: lane-dense normalize + affine + ReLU on a (rows, W*Cout) view.
# ---------------------------------------------------------------------------
def _bn_relu_kernel(y_ref, scale_ref, bias_ref, o_ref):
    y = y_ref[...].astype(jnp.float32)
    o_ref[...] = jnp.maximum(y * scale_ref[...] + bias_ref[...], 0.0).astype(o_ref.dtype)


def conv3x3_bn_relu(x_nhwc, w_oihw, gamma, beta, *, row_tile=None,
                    compute_dtype=jnp.float32):
    n, h, w, cin = x_nhwc.shape
    cout = w_oihw.shape[0]
    itemsize = np.dtype(compute_dtype).itemsize

    if row_tile and h % row_tile == 0:
        th = row_tile
    else:  # ~2 MiB per halo-tile slot keeps 2 slots + weights well inside v7x's VMEM
        budget_rows = max(1, (2 * 1024 * 1024) // max(1, (w + 2) * max(cin, cout) * itemsize))
        th = _largest_divisor(h, budget_rows)
    nh = h // th

    # Spatial zero pad (halo source).
    # TODO(synk): fold the zero padding into the halo DMA (edge memset in VMEM) to avoid
    # this extra XLA copy of the activation.
    xp = jnp.pad(x_nhwc.astype(compute_dtype), ((0, 0), (1, 1), (1, 1), (0, 0)))
    # (Cout, Cin, 3, 3) -> (9, Cin, Cout); tap-major to match the in-kernel (dy, dx) loop.
    w9 = jnp.transpose(w_oihw, (2, 3, 1, 0)).reshape(9, cin, cout).astype(compute_dtype)

    y, psum, pssq = pl.pallas_call(
        _conv_bn_stats_kernel,
        grid=(n, nh),
        out_shape=(
            jax.ShapeDtypeStruct((n, h, w, cout), compute_dtype),
            jax.ShapeDtypeStruct((n, nh, 1, cout), jnp.float32),
            jax.ShapeDtypeStruct((n, nh, 1, cout), jnp.float32),
        ),
        in_specs=[
            pl.BlockSpec(memory_space=pl.ANY),                      # activations stay in HBM
            pl.BlockSpec((9, cin, cout), lambda b, i: (0, 0, 0)),   # resident weights
        ],
        out_specs=(
            pl.BlockSpec((None, th, w, cout), lambda b, i: (b, i, 0, 0)),
            pl.BlockSpec((None, None, 1, cout), lambda b, i: (b, i, 0, 0)),
            pl.BlockSpec((None, None, 1, cout), lambda b, i: (b, i, 0, 0)),
        ),
        scratch_shapes=[
            pltpu.VMEM((2, th + 2, w + 2, cin), compute_dtype),     # double-buffered halo tile
            pltpu.SemaphoreType.DMA((2,)),
        ],
        compiler_params=pltpu.CompilerParams(
            dimension_semantics=("parallel", "arbitrary")),
        cost_estimate=pl.CostEstimate(
            flops=2 * n * h * w * 9 * cin * cout,
            transcendentals=0,
            bytes_accessed=int(xp.size) * itemsize + 9 * cin * cout * itemsize
                           + n * h * w * cout * itemsize + 2 * n * nh * cout * 4),
    )(xp, w9)

    # Finish the BN reduction (tiny) and fold gamma/beta; stats stay f32.
    m = float(n * h * w)
    mean = jnp.sum(psum, axis=(0, 1, 2)) / m
    var = jnp.sum(pssq, axis=(0, 1, 2)) / m - mean * mean          # biased, training-mode
    scale = gamma * lax.rsqrt(var + EPS)
    bias = beta - mean * scale

    # Pass 2: lane-dense (rows, W*Cout) normalize + affine + ReLU.
    rows, wc = n * h, w * cout
    tr = _largest_divisor(rows, 512, multiple=8)
    scale_row = jnp.tile(scale, w).reshape(1, wc)
    bias_row = jnp.tile(bias, w).reshape(1, wc)
    out2 = pl.pallas_call(
        _bn_relu_kernel,
        grid=(rows // tr,),
        out_shape=jax.ShapeDtypeStruct((rows, wc), compute_dtype),
        in_specs=[
            pl.BlockSpec((tr, wc), lambda r: (r, 0)),
            pl.BlockSpec((1, wc), lambda r: (0, 0)),
            pl.BlockSpec((1, wc), lambda r: (0, 0)),
        ],
        out_specs=pl.BlockSpec((tr, wc), lambda r: (r, 0)),
        compiler_params=pltpu.CompilerParams(dimension_semantics=("parallel",)),
        cost_estimate=pl.CostEstimate(
            flops=3 * rows * wc,
            transcendentals=0,
            bytes_accessed=2 * rows * wc * itemsize + 2 * wc * 4),
    )(y.reshape(rows, wc), scale_row, bias_row)
    return out2.reshape(n, h, w, cout)


# ---------------------------------------------------------------------------
# Upsample.forward
# ---------------------------------------------------------------------------
def upsample_forward(params, x_nchw, idx_nchw, *, compute_dtype=jnp.float32,
                     row_tile=None):
    # Boundary layout glue (NCHW <-> NHWC).
    # TODO(synk): fold these transposes into the first/last kernels (pltpu.einshape /
    # index maps) to save two full HBM passes.
    x = jnp.transpose(x_nchw, (0, 2, 3, 1)).astype(compute_dtype)
    idx = jnp.transpose(idx_nchw, (0, 2, 3, 1)).astype(jnp.int32)
    # TODO(synk): fuse the unpool into the first conv's halo DMA so the 4x-sized,
    # 75%-zero unpooled activation never round-trips through HBM.
    x = max_unpool2x2(x, idx)
    for (wt, g, b) in params:
        x = conv3x3_bn_relu(x, wt, g, b, row_tile=row_tile, compute_dtype=compute_dtype)
    return jnp.transpose(x, (0, 3, 1, 2)).astype(jnp.float32)      # back to NCHW


# Pure-JAX reference (mirrors PyTorch semantics) for validation.
def upsample_reference(params, x_nchw, idx_nchw):
    n, c, hp, wp = x_nchw.shape
    h, w = 2 * hp, 2 * wp
    flat = jnp.zeros((n, c, h * w), x_nchw.dtype)
    flat = flat.at[
        jnp.arange(n)[:, None, None],
        jnp.arange(c)[None, :, None],
        idx_nchw.reshape(n, c, hp * wp),
    ].set(x_nchw.reshape(n, c, hp * wp))
    x = flat.reshape(n, c, h, w)
    for (wt, g, b) in params:
        y = lax.conv_general_dilated(
            x, wt, window_strides=(1, 1), padding=((1, 1), (1, 1)),
            dimension_numbers=("NCHW", "OIHW", "NCHW"))
        mean = jnp.mean(y, axis=(0, 2, 3), keepdims=True)
        var = jnp.mean(jnp.square(y - mean), axis=(0, 2, 3), keepdims=True)
        y = (y - mean) * lax.rsqrt(var + EPS)
        y = y * g[None, :, None, None] + b[None, :, None, None]
        x = jnp.maximum(y, 0.0)
    return x


if __name__ == "__main__":
    # Upsample(in_features=4, out_features=8, num_conv_layers=2)
    in_features, out_features, num_conv_layers = 4, 8, 2
    N, Hp, Wp = 2, 8, 8                       # pooled input -> unpooled 16x16

    key = jax.random.PRNGKey(0)
    k_x, k_dy, k_dx, k_w, k_g, k_b = jax.random.split(key, 6)

    x = jax.random.normal(k_x, (N, in_features, Hp, Wp), jnp.float32)
    # synthetic max-pool indices: each lies inside its own 2x2 window of the (2Hp, 2Wp) plane
    dy = jax.random.randint(k_dy, (N, in_features, Hp, Wp), 0, 2)
    dx = jax.random.randint(k_dx, (N, in_features, Hp, Wp), 0, 2)
    hh = jnp.arange(Hp)[None, None, :, None]
    ww = jnp.arange(Wp)[None, None, None, :]
    idx = ((2 * hh + dy) * (2 * Wp) + (2 * ww + dx)).astype(jnp.int32)

    # Parameters (PyTorch shapes: conv weight (Cout, Cin, 3, 3); BN gamma/beta (Cout,)).
    # Non-trivial gamma/beta so the affine part of BN is actually exercised.
    params = []
    cin = in_features
    for li in range(num_conv_layers):
        k_w, sub = jax.random.split(k_w)
        wgt = 0.1 * jax.random.normal(sub, (out_features, cin, 3, 3), jnp.float32)
        gamma = 1.0 + 0.1 * jax.random.normal(jax.random.fold_in(k_g, li),
                                              (out_features,), jnp.float32)
        beta = 0.1 * jax.random.normal(jax.random.fold_in(k_b, li),
                                       (out_features,), jnp.float32)
        params.append((wgt, gamma, beta))
        cin = out_features

    ref = upsample_reference(params, x, idx)

    # f32 path (tight check). row_tile=8 -> 2 halo tiles per image so the manual
    # double-buffered DMA pipeline actually runs multiple steps at this toy size.
    out = upsample_forward(params, x, idx, compute_dtype=jnp.float32, row_tile=8)
    out = jax.block_until_ready(out)
    assert out.shape == (N, out_features, 2 * Hp, 2 * Wp), out.shape
    max_err = float(jnp.max(jnp.abs(out - ref)))
    assert jnp.allclose(out, ref, rtol=1e-3, atol=1e-3), f"f32 max_err={max_err}"

    # bf16 MXU path (v6e/v7x optimization): dots in bf16, accumulation/BN stats in f32.
    # Loose check only - bf16 carries ~2^-8 relative precision.
    out_bf = upsample_forward(params, x, idx, compute_dtype=jnp.bfloat16, row_tile=8)
    out_bf = jax.block_until_ready(out_bf)
    mean_err_bf = float(jnp.mean(jnp.abs(out_bf - ref)))
    max_err_bf = float(jnp.max(jnp.abs(out_bf - ref)))
    assert mean_err_bf < 0.05 and max_err_bf < 0.3, (mean_err_bf, max_err_bf)

    print("KERNEL_OK")
</pallas_src>

<mosaic_0001>
module attributes {stable_mosaic.version = 11 : i64} {
  func.func @_unpool_kernel(%arg0: i32, %arg1: i32, %arg2: memref<1x8x8x4xf32, #tpu.memory_space<vmem>>, %arg3: memref<1x8x8x4xi32, #tpu.memory_space<vmem>>, %arg4: memref<1x8x2x8x8xf32, #tpu.memory_space<vmem>>) attributes {dimension_semantics = [#tpu.dimension_semantics<parallel>, #tpu.dimension_semantics<parallel>], iteration_bounds = array<i64: 2, 1>, scalar_prefetch = 0 : i64, scratch_operands = 0 : i64, tpu.core_type = #tpu.core_type<tc>, window_params = [{transform_indices = @transform_0, window_bounds = array<i64: 1, 8, 8, 4>}, {transform_indices = @transform_1, window_bounds = array<i64: 1, 8, 8, 4>}, {transform_indices = @transform_2, window_bounds = array<i64: 1, 8, 2, 8, 8>}]} {
    %c8_i32 = arith.constant 8 : i32
    %0 = arith.muli %arg1, %c8_i32 : i32
    %c0 = arith.constant 0 : index
    %c0_0 = arith.constant 0 : index
    %c0_1 = arith.constant 0 : index
    %c0_2 = arith.constant 0 : index
    %1 = vector.load %arg2[%c0, %c0_0, %c0_1, %c0_2] : memref<1x8x8x4xf32, #tpu.memory_space<vmem>>, vector<1x8x8x4xf32>
    %2 = vector.shape_cast %1 : vector<1x8x8x4xf32> to vector<8x8x4xf32>
    %c0_3 = arith.constant 0 : index
    %c0_4 = arith.constant 0 : index
    %c0_5 = arith.constant 0 : index
    %c0_6 = arith.constant 0 : index
    %3 = vector.load %arg3[%c0_3, %c0_4, %c0_5, %c0_6] : memref<1x8x8x4xi32, #tpu.memory_space<vmem>>, vector<1x8x8x4xi32>
    %4 = vector.shape_cast %3 : vector<1x8x8x4xi32> to vector<8x8x4xi32>
    %5 = tpu.iota {dimensions = array<i32: 0>} : vector<8x8x4xi32>
    %6 = vector.broadcast %0 : i32 to vector<8x8x4xi32>
    %7 = arith.addi %6, %5 : vector<8x8x4xi32>
    %8 = tpu.iota {dimensions = array<i32: 1>} : vector<8x8x4xi32>
    %cst = arith.constant 0.000000e+00 : f32
    %9 = vector.broadcast %cst : f32 to vector<8x8x4xf32>
    %c2_i32 = arith.constant 2 : i32
    %10 = vector.broadcast %c2_i32 : i32 to vector<8x8x4xi32>
    %11 = arith.muli %10, %7 : vector<8x8x4xi32>
    %c0_i32 = arith.constant 0 : i32
    %12 = vector.broadcast %c0_i32 : i32 to vector<8x8x4xi32>
    %13 = arith.addi %11, %12 : vector<8x8x4xi32>
    %c16_i32 = arith.constant 16 : i32
    %14 = vector.broadcast %c16_i32 : i32 to vector<8x8x4xi32>
    %15 = arith.muli %13, %14 : vector<8x8x4xi32>
    %c2_i32_7 = arith.constant 2 : i32
    %16 = vector.broadcast %c2_i32_7 : i32 to vector<8x8x4xi32>
    %17 = arith.muli %16, %8 : vector<8x8x4xi32>
    %c0_i32_8 = arith.constant 0 : i32
    %18 = vector.broadcast %c0_i32_8 : i32 to vector<8x8x4xi32>
    %19 = arith.addi %17, %18 : vector<8x8x4xi32>
    %20 = arith.addi %15, %19 : vector<8x8x4xi32>
    %21 = arith.cmpi eq, %4, %20 : vector<8x8x4xi32>
    %22 = arith.select %21, %2, %9 : vector<8x8x4xi1>, vector<8x8x4xf32>
    %c2_i32_9 = arith.constant 2 : i32
    %23 = vector.broadcast %c2_i32_9 : i32 to vector<8x8x4xi32>
    %24 = arith.muli %23, %7 : vector<8x8x4xi32>
    %c0_i32_10 = arith.constant 0 : i32
    %25 = vector.broadcast %c0_i32_10 : i32 to vector<8x8x4xi32>
    %26 = arith.addi %24, %25 : vector<8x8x4xi32>
    %c16_i32_11 = arith.constant 16 : i32
    %27 = vector.broadcast %c16_i32_11 : i32 to vector<8x8x4xi32>
    %28 = arith.muli %26, %27 : vector<8x8x4xi32>
    %c2_i32_12 = arith.constant 2 : i32
    %29 = vector.broadcast %c2_i32_12 : i32 to vector<8x8x4xi32>
    %30 = arith.muli %29, %8 : vector<8x8x4xi32>
    %c1_i32 = arith.constant 1 : i32
    %31 = vector.broadcast %c1_i32 : i32 to vector<8x8x4xi32>
    %32 = arith.addi %30, %31 : vector<8x8x4xi32>
    %33 = arith.addi %28, %32 : vector<8x8x4xi32>
    %34 = arith.cmpi eq, %4, %33 : vector<8x8x4xi32>
    %35 = arith.select %34, %2, %9 : vector<8x8x4xi1>, vector<8x8x4xf32>
    %36 = tpu.concatenate %22, %35 in 2 : vector<8x8x4xf32>, vector<8x8x4xf32> -> vector<8x8x8xf32>
    %c0_13 = arith.constant 0 : index
    %c0_14 = arith.constant 0 : index
    %c0_15 = arith.constant 0 : index
    %c0_16 = arith.constant 0 : index
    %c0_17 = arith.constant 0 : index
    %37 = vector.load %arg4[%c0_13, %c0_14, %c0_15, %c0_16, %c0_17] : memref<1x8x2x8x8xf32, #tpu.memory_space<vmem>>, vector<1x8x1x8x8xf32>
    %38 = vector.shape_cast %37 : vector<1x8x1x8x8xf32> to vector<8x8x8xf32>
    %39 = vector.shape_cast %36 : vector<8x8x8xf32> to vector<1x8x1x8x8xf32>
    tpu.vector_store %arg4[%c0_13, %c0_14, %c0_15, %c0_16, %c0_17], %39 {strides = array<i32>} : memref<1x8x2x8x8xf32, #tpu.memory_space<vmem>>, vector<1x8x1x8x8xf32>,
    %c2_i32_18 = arith.constant 2 : i32
    %40 = vector.broadcast %c2_i32_18 : i32 to vector<8x8x4xi32>
    %41 = arith.muli %40, %7 : vector<8x8x4xi32>
    %c1_i32_19 = arith.constant 1 : i32
    %42 = vector.broadcast %c1_i32_19 : i32 to vector<8x8x4xi32>
    %43 = arith.addi %41, %42 : vector<8x8x4xi32>
    %c16_i32_20 = arith.constant 16 : i32
    %44 = vector.broadcast %c16_i32_20 : i32 to vector<8x8x4xi32>
    %45 = arith.muli %43, %44 : vector<8x8x4xi32>
    %c2_i32_21 = arith.constant 2 : i32
    %46 = vector.broadcast %c2_i32_21 : i32 to vector<8x8x4xi32>
    %47 = arith.muli %46, %8 : vector<8x8x4xi32>
    %c0_i32_22 = arith.constant 0 : i32
    %48 = vector.broadcast %c0_i32_22 : i32 to vector<8x8x4xi32>
    %49 = arith.addi %47, %48 : vector<8x8x4xi32>
    %50 = arith.addi %45, %49 : vector<8x8x4xi32>
    %51 = arith.cmpi eq, %4, %50 : vector<8x8x4xi32>
    %52 = arith.select %51, %2, %9 : vector<8x8x4xi1>, vector<8x8x4xf32>
    %c2_i32_23 = arith.constant 2 : i32
    %53 = vector.broadcast %c2_i32_23 : i32 to vector<8x8x4xi32>
    %54 = arith.muli %53, %7 : vector<8x8x4xi32>
    %c1_i32_24 = arith.constant 1 : i32
    %55 = vector.broadcast %c1_i32_24 : i32 to vector<8x8x4xi32>
    %56 = arith.addi %54, %55 : vector<8x8x4xi32>
    %c16_i32_25 = arith.constant 16 : i32
    %57 = vector.broadcast %c16_i32_25 : i32 to vector<8x8x4xi32>
    %58 = arith.muli %56, %57 : vector<8x8x4xi32>
    %c2_i32_26 = arith.constant 2 : i32
    %59 = vector.broadcast %c2_i32_26 : i32 to vector<8x8x4xi32>
    %60 = arith.muli %59, %8 : vector<8x8x4xi32>
    %c1_i32_27 = arith.constant 1 : i32
    %61 = vector.broadcast %c1_i32_27 : i32 to vector<8x8x4xi32>
    %62 = arith.addi %60, %61 : vector<8x8x4xi32>
    %63 = arith.addi %58, %62 : vector<8x8x4xi32>
    %64 = arith.cmpi eq, %4, %63 : vector<8x8x4xi32>
    %65 = arith.select %64, %2, %9 : vector<8x8x4xi1>, vector<8x8x4xf32>
    %66 = tpu.concatenate %52, %65 in 2 : vector<8x8x4xf32>, vector<8x8x4xf32> -> vector<8x8x8xf32>
    %c0_28 = arith.constant 0 : index
    %c0_29 = arith.constant 0 : index
    %c1 = arith.constant 1 : index
    %c0_30 = arith.constant 0 : index
    %c0_31 = arith.constant 0 : index
    %67 = vector.load %arg4[%c0_28, %c0_29, %c1, %c0_30, %c0_31] : memref<1x8x2x8x8xf32, #tpu.memory_space<vmem>>, vector<1x8x1x8x8xf32>
    %68 = vector.shape_cast %67 : vector<1x8x1x8x8xf32> to vector<8x8x8xf32>
    %69 = vector.shape_cast %66 : vector<8x8x8xf32> to vector<1x8x1x8x8xf32>
    tpu.vector_store %arg4[%c0_28, %c0_29, %c1, %c0_30, %c0_31], %69 {strides = array<i32>} : memref<1x8x2x8x8xf32, #tpu.memory_space<vmem>>, vector<1x8x1x8x8xf32>,
    return
  }
  func.func @transform_0(%arg0: i32, %arg1: i32) -> (i32, i32, i32, i32) {
    %c0_i32 = arith.constant 0 : i32
    %c0_i32_0 = arith.constant 0 : i32
    %c0_i32_1 = arith.constant 0 : i32
    return %arg0, %arg1, %c0_i32, %c0_i32_0 : i32, i32, i32, i32
  }
  func.func @transform_1(%arg0: i32, %arg1: i32) -> (i32, i32, i32, i32) {
    %c0_i32 = arith.constant 0 : i32
    %c0_i32_0 = arith.constant 0 : i32
    %c0_i32_1 = arith.constant 0 : i32
    return %arg0, %arg1, %c0_i32, %c0_i32_0 : i32, i32, i32, i32
  }
  func.func @transform_2(%arg0: i32, %arg1: i32) -> (i32, i32, i32, i32, i32) {
    %c0_i32 = arith.constant 0 : i32
    %c0_i32_0 = arith.constant 0 : i32
    %c0_i32_1 = arith.constant 0 : i32
    %c0_i32_2 = arith.constant 0 : i32
    return %arg0, %arg1, %c0_i32, %c0_i32_0, %c0_i32_1 : i32, i32, i32, i32, i32
  }
}

</mosaic_0001>

<llo_original>
// kernel: tpu_custom_call.1
$region0: #{tpu_custom_call.1}
  #allocation0 [shape = 'u32[]', space=smem, size = 0x4, offset = 0x4, fixed_abs, tag = 'smem constant byte address 0x4 - core index']
  #allocation1 [shape = 'u32[72,128]{1,0:T(1,128)}', space=vmem, size = 0x9000, scoped, tag = 'internal scratch']
  %s0 = inlined_call_operand.vmem [shape: f32[2,8,8,4], index: 0, kind: input, shape index: {}]
  %s1 = inlined_call_operand.vmem [shape: s32[2,8,8,4], index: 1, kind: input, shape index: {}]
  %s2 = inlined_call_operand.hbm [shape: f32[2,8,2,8,8], index: 2, kind: output, shape index: {}]
  %s3 = sld [smem:[#allocation0]]
  $region41: #{tpu_custom_call.1} parent=0
    _
  %s5 = ssub.s32 1, %s3
  %s6 = scalar_select 0, %s5, %s3
  $region1: #{tpu_custom_call.1} parent=0
    #allocation2 [shape = 'u8[131072]{0}', space=vmem, size = 0x20000, scoped, tag = 'output window, operand 0']
    #allocation3 [shape = 's32[2]{0}', space=sflag, size = 0x8, scoped, tag = 'scoped memory for tpu_custom_call.1']
    %7 = vsyncpa [#allocation3], 0
    %s8 = scalar_lea.sflag [#allocation3], 1
    %9 = vsyncpa %s8, 0
    loop: start=0, step=1, limit=4
    $region2: #{tpu_custom_call.1} parent=1 // loop_pre_header
      _
    $region3: #{tpu_custom_call.1} parent=1 // loop_header
      %s11 = sphi 0, %s15
      %p12 = scmp.ge.s32.totalorder %s11, 4
      %s18 = sphi 0, %s30
      %s19 = sphi 0, %s26
      %s20 = sphi 0, %s18
      %s21 = sphi 0, %s19
      %s22 = sphi 0, %s20
      %s23 = sphi 0, %s21
      %s35 = sphi 0, %s37
      %s38 = sphi 0, %s35
      %s39 = sphi 0, %s38
      %s55 = sphi 0, %s39
      %s63 = sphi 0, %s65
      %s66 = sphi 0, %s63
      %s67 = sphi 0, %s66
      %s83 = sphi 0, %s67
      %s91 = sphi 0, %s93
      %s94 = sphi 0, %s91
      %s95 = sphi 0, %s94
      %s111 = sphi 0, %s95
    $region4: #{tpu_custom_call.1} parent=1 // loop_header_branch
      %14 = sbr.rel (%p12) target = $region8
    $region5: #{tpu_custom_call.1} parent=1 // loop_body
      %s16 = ssub.s32 %s11, 1
      %s17 = ssub.s32 %s11, 2
      %s24 = sadd.s32 1, %s19
      %p25 = scmp.ge.s32.totalorder %s24, 1
      %s26 = scalar_select %p25, 0, %s24
      %s27 = sadd.s32 1, %s18
      %s28 = scalar_select %p25, %s27, %s18
      %p29 = scmp.ge.s32.totalorder %s28, 2
      %s30 = scalar_select %p29, 0, %s28
      %s31 = ssub.s32 %s18, %s30
      %s32 = ssub.s32 %s19, %s26
      %s33 = sor.u32 %s31, %s32
      %p34 = scmp.eq.s32.totalorder %s33, 0
      %s36 = sadd.s32 %s35, 1
      %s37 = scalar_select %p34, %s35, %s36
      %p40 = pneg %p34
      %p41 = scmp.eq.s32.totalorder %s11, 1
      %p42 = por %p40, %p41
      %p43 = scmp.ne.s32.totalorder %s35, %s38
      %p44 = scmp.eq.s32.totalorder %s11, 0
      %p45 = por %p43, %p44
      %p46 = scmp.ne.s32.totalorder %s35, %s38
      %p47 = scmp.eq.s32.totalorder %s16, 1
      %p48 = por %p46, %p47
      %p49 = scmp.ne.s32.totalorder %s38, %s39
      %p50 = scmp.eq.s32.totalorder %s16, 0
      %p51 = por %p49, %p50
      %p52 = scmp.ne.s32.totalorder %s38, %s39
      %p53 = scmp.eq.s32.totalorder %s17, 1
      %p54 = por %p52, %p53
      %p56 = scmp.ne.s32.totalorder %s39, %s55
      %p57 = scmp.eq.s32.totalorder %s17, 0
      %p58 = por %p56, %p57
      %s59 = ssub.s32 %s18, %s30
      %s60 = ssub.s32 %s19, %s26
      %s61 = sor.u32 %s59, %s60
      %p62 = scmp.eq.s32.totalorder %s61, 0
      %s64 = sadd.s32 %s63, 1
      %s65 = scalar_select %p62, %s63, %s64
      %p68 = pneg %p62
      %p69 = scmp.eq.s32.totalorder %s11, 1
      %p70 = por %p68, %p69
      %p71 = scmp.ne.s32.totalorder %s63, %s66
      %p72 = scmp.eq.s32.totalorder %s11, 0
      %p73 = por %p71, %p72
      %p74 = scmp.ne.s32.totalorder %s63, %s66
      %p75 = scmp.eq.s32.totalorder %s16, 1
      %p76 = por %p74, %p75
      %p77 = scmp.ne.s32.totalorder %s66, %s67
      %p78 = scmp.eq.s32.totalorder %s16, 0
      %p79 = por %p77, %p78
      %p80 = scmp.ne.s32.totalorder %s66, %s67
      %p81 = scmp.eq.s32.totalorder %s17, 1
      %p82 = por %p80, %p81
      %p84 = scmp.ne.s32.totalorder %s67, %s83
      %p85 = scmp.eq.s32.totalorder %s17, 0
      %p86 = por %p84, %p85
      %s87 = ssub.s32 %s18, %s30
      %s88 = ssub.s32 %s19, %s26
      %s89 = sor.u32 %s87, %s88
      %p90 = scmp.eq.s32.totalorder %s89, 0
      %s92 = sadd.s32 %s91, 1
      %s93 = scalar_select %p90, %s91, %s92
      %p96 = pneg %p90
      %p97 = scmp.eq.s32.totalorder %s11, 1
      %p98 = por %p96, %p97
      %p99 = scmp.ne.s32.totalorder %s91, %s94
      %p100 = scmp.eq.s32.totalorder %s11, 0
      %p101 = por %p99, %p100
      %p102 = scmp.ne.s32.totalorder %s91, %s94
      %p103 = scmp.eq.s32.totalorder %s16, 1
      %p104 = por %p102, %p103
      %p105 = scmp.ne.s32.totalorder %s94, %s95
      %p106 = scmp.eq.s32.totalorder %s16, 0
      %p107 = por %p105, %p106
      %p108 = scmp.ne.s32.totalorder %s94, %s95
      %p109 = scmp.eq.s32.totalorder %s17, 1
      %p110 = por %p108, %p109
      %p112 = scmp.ne.s32.totalorder %s95, %s111
      %p113 = scmp.eq.s32.totalorder %s17, 0
      %p114 = por %p112, %p113
      %p115 = scmp.le.s32.totalorder 1, %s11
      %p116 = scmp.lt.s32.totalorder %s11, 3
      %p117 = pnand %p115, %p116
      %p118 = pneg %p117
      // Predicated region
      $region9: #{tpu_custom_call.1} parent=5 // pred_check
        _
      $region10: #{tpu_custom_call.1} parent=5 // pred_check_branch
        %120 = sbr.rel (%p117) target = $region12
      $region11: #{tpu_custom_call.1} parent=5 // pred_region
        %s121 = ssub.s32 %s11, 1
      $region12: #{tpu_custom_call.1} parent=5 // pred_fallthru
        _
      %p122 = scmp.lt.s32.totalorder %s11, 2
      // Predicated region
      $region13: #{tpu_custom_call.1} parent=5 // pred_check
        %p123 = pneg %p122
      $region14: #{tpu_custom_call.1} parent=5 // pred_check_branch
        %125 = sbr.rel (%p123) target = $region16
      $region15: #{tpu_custom_call.1} parent=5 // pred_region
        // Predicated region
        $region17: #{tpu_custom_call.1} parent=15 // pred_check
          %p126 = pneg %p45
        $region18: #{tpu_custom_call.1} parent=15 // pred_check_branch
          %128 = sbr.rel (%p126) target = $region20
        $region19: #{tpu_custom_call.1} parent=15 // pred_region
          %s129 = smul.u32 8, %s19
          %p130 = scmp.lt.s32.totalorder %s18, 1
          %s131 = scalar_select %p130, %s18, 1
          %p132 = scmp.lt.s32.totalorder %s129, 7
          %s133 = scalar_select %p132, %s129, 7
          %s134 = smul.addr %s131, 8
          %s135 = sadd.s32 %s133, %s134
          %s136 = smul.addr %s135, 8
          %s137 = scalar_lea.vmem %s0, %s136
          %s138 = smul.u32 8, %s19
        $region20: #{tpu_custom_call.1} parent=15 // pred_fallthru
          _
        // Predicated region
        $region21: #{tpu_custom_call.1} parent=15 // pred_check
          %p139 = pneg %p73
        $region22: #{tpu_custom_call.1} parent=15 // pred_check_branch
          %141 = sbr.rel (%p139) target = $region24
        $region23: #{tpu_custom_call.1} parent=15 // pred_region
          %s142 = smul.u32 8, %s19
          %p143 = scmp.lt.s32.totalorder %s18, 1
          %s144 = scalar_select %p143, %s18, 1
          %p145 = scmp.lt.s32.totalorder %s142, 7
          %s146 = scalar_select %p145, %s142, 7
          %s147 = smul.addr %s144, 8
          %s148 = sadd.s32 %s146, %s147
          %s149 = smul.addr %s148, 8
          %s150 = scalar_lea.vmem %s1, %s149
          %s151 = smul.u32 8, %s19
        $region24: #{tpu_custom_call.1} parent=15 // pred_fallthru
          _
      $region16: #{tpu_custom_call.1} parent=5 // pred_fallthru
        _
      %p152 = scmp.le.s32.totalorder 1, %s11
      %p153 = scmp.lt.s32.totalorder %s11, 3
      %p154 = pnand %p152, %p153
      %p155 = pneg %p154
      // Predicated region
      $region25: #{tpu_custom_call.1} parent=5 // pred_check
        _
      $region26: #{tpu_custom_call.1} parent=5 // pred_check_branch
        %157 = sbr.rel (%p154) target = $region28
      $region27: #{tpu_custom_call.1} parent=5 // pred_region
        %s158 = ssub.s32 %s11, 1
        %s159 = smul.u32 8, %s21
        %p160 = scmp.lt.s32.totalorder %s20, 1
        %s161 = scalar_select %p160, %s20, 1
        %p162 = scmp.lt.s32.totalorder %s159, 7
        %s163 = scalar_select %p162, %s159, 7
        %s164 = smul.addr %s161, 8
        %s165 = sadd.s32 %s163, %s164
        %s166 = smul.addr %s165, 8
        %s167 = scalar_lea.vmem %s0, %s166
        %p168 = pneg %p51
        %p169 = pneg %p48
        %s170 = smul.u32 8, %s21
        %p171 = scmp.lt.s32.totalorder %s20, 1
        %s172 = scalar_select %p171, %s20, 1
        %p173 = scmp.lt.s32.totalorder %s170, 7
        %s174 = scalar_select %p173, %s170, 7
        %s175 = smul.addr %s172, 8
        %s176 = sadd.s32 %s174, %s175
        %s177 = smul.addr %s176, 8
        %s178 = scalar_lea.vmem %s1, %s177
        %p179 = pneg %p79
        %p180 = pneg %p76
        %p181 = pneg %p107
        %p182 = pneg %p104
        %s183 = sand.u32 %s94, 1
        %s184 = scalar_lea.sflag [#allocation3], %s183
        %s185 = sand.u32 %s94, 1
        %s186 = smul.addr %s185, 128
        %s187 = scalar_lea.vmem [#allocation2], %s186
        %s188 = smul.u32 8, %s21
        %p189 = scmp.lt.s32.totalorder %s20, 1
        %s190 = scalar_select %p189, %s20, 1
        %p191 = scmp.lt.s32.totalorder %s188, 7
        %s192 = scalar_select %p191, %s188, 7
        %s193 = smul.addr %s190, 8
        %s194 = sadd.s32 %s192, %s193
        %s195 = smul.addr %s194, 8
        %s196 = scalar_lea.vmem %s0, %s195
        %s197 = smul.u32 8, %s21
        %s198 = smul.u32 8, %s21
        %p199 = scmp.lt.s32.totalorder %s20, 1
        %s200 = scalar_select %p199, %s20, 1
        %p201 = scmp.lt.s32.totalorder %s198, 7
        %s202 = scalar_select %p201, %s198, 7
        %s203 = smul.addr %s200, 8
        %s204 = sadd.s32 %s202, %s203
        %s205 = smul.addr %s204, 8
        %s206 = scalar_lea.vmem %s1, %s205
        %s207 = smul.u32 8, %s21
        %s208 = smul.u32 8, %s21
        %s209 = smul.u32 %s21, 8
        %v210 = vld [vmem:[%s196] sm:$0xff]
        %v211 = vld [vmem:[%s196 + $0x8] sm:$0xff]
        %v212 = vld [vmem:[%s196 + $0x10] sm:$0xff]
        %v213 = vld [vmem:[%s196 + $0x18] sm:$0xff]
        %v214 = vld [vmem:[%s196 + $0x20] sm:$0xff]
        %v215 = vld [vmem:[%s196 + $0x28] sm:$0xff]
        %v216 = vld [vmem:[%s196 + $0x30] sm:$0xff]
        %v217 = vld [vmem:[%s196 + $0x38] sm:$0xff]
        %v218 = vld [vmem:[%s206] sm:$0xff]
        %v219 = vld [vmem:[%s206 + $0x8] sm:$0xff]
        %v220 = vld [vmem:[%s206 + $0x10] sm:$0xff]
        %v221 = vld [vmem:[%s206 + $0x18] sm:$0xff]
        %v222 = vld [vmem:[%s206 + $0x20] sm:$0xff]
        %v223 = vld [vmem:[%s206 + $0x28] sm:$0xff]
        %v224 = vld [vmem:[%s206 + $0x30] sm:$0xff]
        %v225 = vld [vmem:[%s206 + $0x38] sm:$0xff]
        %v226 = vstv %s209
        %v227 = vadd.s32 %v226, 1
        %v228 = vadd.s32 %v226, 2
        %v229 = vadd.s32 %v226, 3
        %v230 = vadd.s32 %v226, 4
        %v231 = vadd.s32 %v226, 5
        %v232 = vadd.s32 %v226, 6
        %v233 = vadd.s32 %v226, 7
        %v234 = vlaneseq
        %v235 = vshrl.u32 %v234, 7
        %v236 = vmul.u32 %v226, 2
        %v237 = vmul.u32 %v227, 2
        %v238 = vmul.u32 %v228, 2
        %v239 = vmul.u32 %v229, 2
        %v240 = vmul.u32 %v230, 2
        %v241 = vmul.u32 %v231, 2
        %v242 = vmul.u32 %v232, 2
        %v243 = vmul.u32 %v233, 2
        %v244 = vmul.u32 %v236, 16
        %v245 = vmul.u32 %v237, 16
        %v246 = vmul.u32 %v238, 16
        %v247 = vmul.u32 %v239, 16
        %v248 = vmul.u32 %v240, 16
        %v249 = vmul.u32 %v241, 16
        %v250 = vmul.u32 %v242, 16
        %v251 = vmul.u32 %v243, 16
        %v252 = vmul.u32 %v235, 2
        %v253 = vadd.s32 %v244, %v252
        %v254 = vadd.s32 %v245, %v252
        %v255 = vadd.s32 %v246, %v252
        %v256 = vadd.s32 %v247, %v252
        %v257 = vadd.s32 %v248, %v252
        %v258 = vadd.s32 %v249, %v252
        %v259 = vadd.s32 %v250, %v252
        %v260 = vadd.s32 %v251, %v252
        %vm261 = vcmp.eq.s32.totalorder %v218, %v253
        %vm262 = vcmp.eq.s32.totalorder %v219, %v254
        %vm263 = vcmp.eq.s32.totalorder %v220, %v255
        %vm264 = vcmp.eq.s32.totalorder %v221, %v256
        %vm265 = vcmp.eq.s32.totalorder %v222, %v257
        %vm266 = vcmp.eq.s32.totalorder %v223, %v258
        %vm267 = vcmp.eq.s32.totalorder %v224, %v259
        %vm268 = vcmp.eq.s32.totalorder %v225, %v260
        %v269 = vsel %vm261, %v210, 0.0
        %v270 = vsel %vm262, %v211, 0.0
        %v271 = vsel %vm263, %v212, 0.0
        %v272 = vsel %vm264, %v213, 0.0
        %v273 = vsel %vm265, %v214, 0.0
        %v274 = vsel %vm266, %v215, 0.0
        %v275 = vsel %vm267, %v216, 0.0
        %v276 = vsel %vm268, %v217, 0.0
        %v277 = vadd.s32 %v252, 1
        %v278 = vadd.s32 %v244, %v277
        %v279 = vadd.s32 %v245, %v277
        %v280 = vadd.s32 %v246, %v277
        %v281 = vadd.s32 %v247, %v277
        %v282 = vadd.s32 %v248, %v277
        %v283 = vadd.s32 %v249, %v277
        %v284 = vadd.s32 %v250, %v277
        %v285 = vadd.s32 %v251, %v277
        %vm286 = vcmp.eq.s32.totalorder %v218, %v278
        %vm287 = vcmp.eq.s32.totalorder %v219, %v279
        %vm288 = vcmp.eq.s32.totalorder %v220, %v280
        %vm289 = vcmp.eq.s32.totalorder %v221, %v281
        %vm290 = vcmp.eq.s32.totalorder %v222, %v282
        %vm291 = vcmp.eq.s32.totalorder %v223, %v283
        %vm292 = vcmp.eq.s32.totalorder %v224, %v284
        %vm293 = vcmp.eq.s32.totalorder %v225, %v285
        %v294 = vsel %vm286, %v210, 0.0
        %v295 = vsel %vm287, %v211, 0.0
        %v296 = vsel %vm288, %v212, 0.0
        %v297 = vsel %vm289, %v213, 0.0
        %v298 = vsel %vm290, %v214, 0.0
        %v299 = vsel %vm291, %v215, 0.0
        %v300 = vsel %vm292, %v216, 0.0
        %v301 = vsel %vm293, %v217, 0.0
        %310 = vrot.lane.b32.xlu0 %v294, 4
        %v311 = vpop.permute.xlu0 %310
        %312 = vrot.lane.b32.xlu0 %v295, 4
        %v313 = vpop.permute.xlu0 %312
        %314 = vrot.lane.b32.xlu0 %v296, 4
        %v315 = vpop.permute.xlu0 %314
        %316 = vrot.lane.b32.xlu0 %v297, 4
        %v317 = vpop.permute.xlu0 %316
        %318 = vrot.lane.b32.xlu0 %v298, 4
        %v319 = vpop.permute.xlu0 %318
        %320 = vrot.lane.b32.xlu0 %v299, 4
        %v321 = vpop.permute.xlu0 %320
        %322 = vrot.lane.b32.xlu0 %v300, 4
        %v323 = vpop.permute.xlu0 %322
        %324 = vrot.lane.b32.xlu0 %v301, 4
        %v325 = vpop.permute.xlu0 %324
        %vm334 = vcmask 31744
        %v335 = vsel %vm334, %v269, %v311
        %v336 = vsel %vm334, %v270, %v313
        %v337 = vsel %vm334, %v271, %v315
        %v338 = vsel %vm334, %v272, %v317
        %v339 = vsel %vm334, %v273, %v319
        %v340 = vsel %vm334, %v274, %v321
        %v341 = vsel %vm334, %v275, %v323
        %v342 = vsel %vm334, %v276, %v325
        %vm343 = vcmask 64512
        %344 = vst.msk [vmem:[%s187] sm:$0xff] %vm343, %v335
        %345 = vst.msk [vmem:[%s187 + $0x10] sm:$0xff] %vm343, %v336
        %346 = vst.msk [vmem:[%s187 + $0x20] sm:$0xff] %vm343, %v337
        %347 = vst.msk [vmem:[%s187 + $0x30] sm:$0xff] %vm343, %v338
        %348 = vst.msk [vmem:[%s187 + $0x40] sm:$0xff] %vm343, %v339
        %349 = vst.msk [vmem:[%s187 + $0x50] sm:$0xff] %vm343, %v340
        %350 = vst.msk [vmem:[%s187 + $0x60] sm:$0xff] %vm343, %v341
        %351 = vst.msk [vmem:[%s187 + $0x70] sm:$0xff] %vm343, %v342
        %v352 = vadd.s32 %v236, 1
        %v353 = vadd.s32 %v237, 1
        %v354 = vadd.s32 %v238, 1
        %v355 = vadd.s32 %v239, 1
        %v356 = vadd.s32 %v240, 1
        %v357 = vadd.s32 %v241, 1
        %v358 = vadd.s32 %v242, 1
        %v359 = vadd.s32 %v243, 1
        %v360 = vmul.u32 %v352, 16
        %v361 = vmul.u32 %v353, 16
        %v362 = vmul.u32 %v354, 16
        %v363 = vmul.u32 %v355, 16
        %v364 = vmul.u32 %v356, 16
        %v365 = vmul.u32 %v357, 16
        %v366 = vmul.u32 %v358, 16
        %v367 = vmul.u32 %v359, 16
        %v368 = vadd.s32 %v360, %v252
        %v369 = vadd.s32 %v361, %v252
        %v370 = vadd.s32 %v362, %v252
        %v371 = vadd.s32 %v363, %v252
        %v372 = vadd.s32 %v364, %v252
        %v373 = vadd.s32 %v365, %v252
        %v374 = vadd.s32 %v366, %v252
        %v375 = vadd.s32 %v367, %v252
        %vm376 = vcmp.eq.s32.totalorder %v218, %v368
        %vm377 = vcmp.eq.s32.totalorder %v219, %v369
        %vm378 = vcmp.eq.s32.totalorder %v220, %v370
        %vm379 = vcmp.eq.s32.totalorder %v221, %v371
        %vm380 = vcmp.eq.s32.totalorder %v222, %v372
        %vm381 = vcmp.eq.s32.totalorder %v223, %v373
        %vm382 = vcmp.eq.s32.totalorder %v224, %v374
        %vm383 = vcmp.eq.s32.totalorder %v225, %v375
        %v384 = vsel %vm376, %v210, 0.0
        %v385 = vsel %vm377, %v211, 0.0
        %v386 = vsel %vm378, %v212, 0.0
        %v387 = vsel %vm379, %v213, 0.0
        %v388 = vsel %vm380, %v214, 0.0
        %v389 = vsel %vm381, %v215, 0.0
        %v390 = vsel %vm382, %v216, 0.0
        %v391 = vsel %vm383, %v217, 0.0
        %v392 = vadd.s32 %v360, %v277
        %v393 = vadd.s32 %v361, %v277
        %v394 = vadd.s32 %v362, %v277
        %v395 = vadd.s32 %v363, %v277
        %v396 = vadd.s32 %v364, %v277
        %v397 = vadd.s32 %v365, %v277
        %v398 = vadd.s32 %v366, %v277
        %v399 = vadd.s32 %v367, %v277
        %vm400 = vcmp.eq.s32.totalorder %v218, %v392
        %vm401 = vcmp.eq.s32.totalorder %v219, %v393
        %vm402 = vcmp.eq.s32.totalorder %v220, %v394
        %vm403 = vcmp.eq.s32.totalorder %v221, %v395
        %vm404 = vcmp.eq.s32.totalorder %v222, %v396
        %vm405 = vcmp.eq.s32.totalorder %v223, %v397
        %vm406 = vcmp.eq.s32.totalorder %v224, %v398
        %vm407 = vcmp.eq.s32.totalorder %v225, %v399
        %v408 = vsel %vm400, %v210, 0.0
        %v409 = vsel %vm401, %v211, 0.0
        %v410 = vsel %vm402, %v212, 0.0
        %v411 = vsel %vm403, %v213, 0.0
        %v412 = vsel %vm404, %v214, 0.0
        %v413 = vsel %vm405, %v215, 0.0
        %v414 = vsel %vm406, %v216, 0.0
        %v415 = vsel %vm407, %v217, 0.0
        %424 = vrot.lane.b32.xlu0 %v408, 4
        %v425 = vpop.permute.xlu0 %424
        %426 = vrot.lane.b32.xlu0 %v409, 4
        %v427 = vpop.permute.xlu0 %426
        %428 = vrot.lane.b32.xlu0 %v410, 4
        %v429 = vpop.permute.xlu0 %428
        %430 = vrot.lane.b32.xlu0 %v411, 4
        %v431 = vpop.permute.xlu0 %430
        %432 = vrot.lane.b32.xlu0 %v412, 4
        %v433 = vpop.permute.xlu0 %432
        %434 = vrot.lane.b32.xlu0 %v413, 4
        %v435 = vpop.permute.xlu0 %434
        %436 = vrot.lane.b32.xlu0 %v414, 4
        %v437 = vpop.permute.xlu0 %436
        %438 = vrot.lane.b32.xlu0 %v415, 4
        %v439 = vpop.permute.xlu0 %438
        %v448 = vsel %vm334, %v384, %v425
        %v449 = vsel %vm334, %v385, %v427
        %v450 = vsel %vm334, %v386, %v429
        %v451 = vsel %vm334, %v387, %v431
        %v452 = vsel %vm334, %v388, %v433
        %v453 = vsel %vm334, %v389, %v435
        %v454 = vsel %vm334, %v390, %v437
        %v455 = vsel %vm334, %v391, %v439
        %s456 = scalar_lea.vmem %s187, 8 [#allocation2]
        %457 = vst.msk [vmem:[%s456] sm:$0xff] %vm343, %v448
        %458 = vst.msk [vmem:[%s456 + $0x10] sm:$0xff] %vm343, %v449
        %459 = vst.msk [vmem:[%s456 + $0x20] sm:$0xff] %vm343, %v450
        %460 = vst.msk [vmem:[%s456 + $0x30] sm:$0xff] %vm343, %v451
        %461 = vst.msk [vmem:[%s456 + $0x40] sm:$0xff] %vm343, %v452
        %462 = vst.msk [vmem:[%s456 + $0x50] sm:$0xff] %vm343, %v453
        %463 = vst.msk [vmem:[%s456 + $0x60] sm:$0xff] %vm343, %v454
        %464 = vst.msk [vmem:[%s456 + $0x70] sm:$0xff] %vm343, %v455
        %s465 = sand.u32 %s94, 1
        %s466 = scalar_lea.sflag [#allocation3], %s465
        %s467 = sand.u32 %s94, 1
        %s468 = smul.addr %s467, 128
        %s469 = scalar_lea.vmem [#allocation2], %s468
        // Predicated region
        $region29: #{tpu_custom_call.1} parent=27 // pred_check
          %p470 = pneg %p104
        $region30: #{tpu_custom_call.1} parent=27 // pred_check_branch
          %472 = sbr.rel (%p470) target = $region32
        $region31: #{tpu_custom_call.1} parent=27 // pred_region
          %s473 = smul.u32 8, %s21
          %475 = vsyncadd %s466, 0
          %s476 = smul.addr %s473, 2
          %s477 = smul.addr %s20, 16
          %s478 = sadd.s32 %s476, %s477
          %s479 = smul.addr %s478, 8
          %s480 = scalar_lea.hbm %s2, %s479
          %s481 = sshll.u32 %s469, 4
          %s482 = int_to_ptr.vmem [resolvable:$true] %s481
          %s483 = sshll.u32 %s480, 4
          %s484 = int_to_ptr.hbm [resolvable:$true] %s483
          %489 = dma.vmem_to_hbm [thread:$0]  %s482, 2048, %s484, %s466, 128, 128, 8
        $region32: #{tpu_custom_call.1} parent=27 // pred_fallthru
          _
      $region28: #{tpu_custom_call.1} parent=5 // pred_fallthru
        _
      %p490 = scmp.le.s32.totalorder 2, %s11
      // Predicated region
      $region33: #{tpu_custom_call.1} parent=5 // pred_check
        %p491 = pneg %p490
      $region34: #{tpu_custom_call.1} parent=5 // pred_check_branch
        %493 = sbr.rel (%p491) target = $region36
      $region35: #{tpu_custom_call.1} parent=5 // pred_region
        %s494 = ssub.s32 %s11, 2
        // Predicated region
        $region37: #{tpu_custom_call.1} parent=35 // pred_check
          %p495 = pneg %p110
        $region38: #{tpu_custom_call.1} parent=35 // pred_check_branch
          %497 = sbr.rel (%p495) target = $region40
        $region39: #{tpu_custom_call.1} parent=35 // pred_region
          %s498 = sand.u32 %s95, 1
          %s499 = scalar_lea.sflag [#allocation3], %s498
          %s500 = sand.u32 %s95, 1
          %s501 = smul.addr %s500, 128
          %s502 = scalar_lea.vmem [#allocation2], %s501
          %504 = dma.done %s499, 2048
        $region40: #{tpu_custom_call.1} parent=35 // pred_fallthru
          _
      $region36: #{tpu_custom_call.1} parent=5 // pred_fallthru
        _
    $region6: #{tpu_custom_call.1} parent=1 // loop_footer
      %s15 = sadd.s32 1, %s11
    $region7: #{tpu_custom_call.1} parent=1 // loop_footer_branch
      %10 = sbr.rel target = $region3
    $region8: #{tpu_custom_call.1} parent=1 // loop_exit
      _
    %505 = vsyncpa [#allocation3], 1
    %s506 = scalar_lea.sflag [#allocation3], 1
    %507 = vsyncpa %s506, 1

</llo_original>
